<compile_context>
chip_gen: v5e
topology: v5e:2x2
jax: 0.10.0
libtpu: 0.0.40
codegen_flags: <defaults>
</compile_context>

<pallas_src>
import functools

import jax
import jax.numpy as jnp
from jax.experimental import pallas as pl
from jax.experimental.pallas import tpu as pltpu

IN_FEATURES = 189
H1 = 128
H2 = 64
NB_CLASSES = 2


def _round_up(x, m):
    return (x + m - 1) // m * m


def _mlp_kernel(x_ref, w1_ref, b1_ref, w2_ref, b2_ref, w3_ref, b3_ref,
                feat_ref, pred_ref):
    # x_ref: (tb, F) f32 streamed block; w*_ref: bf16 VMEM-resident; b*_ref: f32.
    # feat_ref: (tb, 64) f32 ; pred_ref: (tb, nc) f32.

    # Cast the streamed activations to bf16 in-VMEM (x HBM stream stays f32,
    # no separate host-side pad/cast pass).
    x = x_ref[...].astype(jnp.bfloat16)

    # Layer 1: Linear(189 -> 128) + ReLU   (Dropout = identity in eval mode)
    h1 = jnp.dot(x, w1_ref[...], preferred_element_type=jnp.float32) + b1_ref[...]
    h1 = jnp.maximum(h1, 0.0)

    # Layer 2: Linear(128 -> 64) + ReLU    (Dropout = identity in eval mode)
    h2 = jnp.dot(h1.astype(jnp.bfloat16), w2_ref[...],
                 preferred_element_type=jnp.float32) + b2_ref[...]
    h2 = jnp.maximum(h2, 0.0)

    # Classifier: Linear(64 -> 2) + sigmoid (f32 epilogue; v5e has no bf16 VPU/EUP).
    logits = jnp.dot(h2.astype(jnp.bfloat16), w3_ref[...],
                     preferred_element_type=jnp.float32) + b3_ref[...]

    feat_ref[...] = h2.astype(feat_ref.dtype)
    pred_ref[...] = jax.nn.sigmoid(logits).astype(pred_ref.dtype)


@functools.partial(jax.jit, static_argnames=("block_batch",))
def network_forward(x, prepared_params, block_batch=None):
    """Fused MLP forward.

    x: [B, in_features] float32.
    prepared_params: output of `prepare_params` (bf16 weights, f32 row biases),
      prepared once outside the per-call hot path.
    Returns (pred, feature) exactly like the PyTorch module.
    """
    w1, b1, w2, b2, w3, b3 = prepared_params
    B, F = x.shape
    h1 = w1.shape[1]
    h2 = w2.shape[1]
    nc = w3.shape[1]
    assert w1.shape[0] == F and w2.shape[0] == h1 and w3.shape[0] == h2

    # ---- batch tiling --------------------------------------------------------
    # Big tiles amortize per-step pipeline overhead; aim for >= 2 grid steps so
    # the "parallel" batch axis can shard across both TensorCores on v7x.
    if block_batch is None:
        cap = 2048
        tb = min(cap, _round_up(pl.cdiv(max(B, 32), 2), 16))
    else:
        tb = max(16, _round_up(block_batch, 16))
    grid = (pl.cdiv(B, tb),)

    def resident(shape):  # grid-invariant: stays in VMEM across all grid steps
        return pl.BlockSpec(shape, lambda i: (0, 0))

    feature, pred = pl.pallas_call(
        _mlp_kernel,
        grid=grid,
        in_specs=[
            pl.BlockSpec((tb, F), lambda i: (i, 0)),   # x (streamed, unpadded f32)
            resident((F, h1)),                          # W1 (bf16)
            resident((1, h1)),                          # b1 (f32)
            resident((h1, h2)),                         # W2 (bf16)
            resident((1, h2)),                          # b2 (f32)
            resident((h2, nc)),                         # W3 (bf16)
            resident((1, nc)),                          # b3 (f32)
        ],
        out_specs=(
            pl.BlockSpec((tb, h2), lambda i: (i, 0)),   # feature
            pl.BlockSpec((tb, nc), lambda i: (i, 0)),   # pred
        ),
        out_shape=(
            jax.ShapeDtypeStruct((B, h2), jnp.float32),
            jax.ShapeDtypeStruct((B, nc), jnp.float32),
        ),
        compiler_params=pltpu.CompilerParams(
            dimension_semantics=("parallel",),           # megacore sharding on v7x
            vmem_limit_bytes=32 * 1024 * 1024,           # safe on v5e/v6e/v7x
        ),
        cost_estimate=pl.CostEstimate(
            flops=2 * B * (F * h1 + h1 * h2 + h2 * nc),
            transcendentals=B * nc,
            bytes_accessed=(B * F * 4                    # x stream (f32)
                            + B * h2 * 4 + B * nc * 4    # feature + pred (f32)
                            + (F * h1 + h1 * h2 + h2 * nc) * 2
                            + (h1 + h2 + nc) * 4),
        ),
    )(x, w1, b1, w2, b2, w3, b3)

    return pred, feature


def prepare_params(params):
    """One-time prep outside the hot path: bf16 MXU weights, f32 row biases."""
    w1, b1, w2, b2, w3, b3 = params

    def row(b):
        return jnp.asarray(b, jnp.float32).reshape(1, -1)

    return (w1.astype(jnp.bfloat16), row(b1),
            w2.astype(jnp.bfloat16), row(b2),
            w3.astype(jnp.bfloat16), row(b3))


def init_params(key, in_features=IN_FEATURES, hidden=(H1, H2), nb_classes=NB_CLASSES):
    """Deterministic parameter init (PyTorch-Linear-style uniform bounds).
    Weights are stored as (in_features, out_features), i.e. transposed vs PyTorch."""
    ks = jax.random.split(key, 6)

    def lin(kw, kb, fan_in, fan_out):
        bound = 1.0 / jnp.sqrt(fan_in)
        w = jax.random.uniform(kw, (fan_in, fan_out), jnp.float32, -bound, bound)
        b = jax.random.uniform(kb, (1, fan_out), jnp.float32, -bound, bound)
        return w, b

    w1, b1 = lin(ks[0], ks[1], in_features, hidden[0])
    w2, b2 = lin(ks[2], ks[3], hidden[0], hidden[1])
    w3, b3 = lin(ks[4], ks[5], hidden[1], nb_classes)
    return (w1, b1, w2, b2, w3, b3)


def _reference(x, params):
    """Pure-JAX reference mirroring the kernel's numerics (bf16 MXU operands,
    f32 accumulation / epilogue).  Note: bf16 operands deviate slightly from a
    full-f32 PyTorch forward."""
    w1, b1, w2, b2, w3, b3 = params
    bf = jnp.bfloat16
    h1 = jnp.maximum(jnp.dot(x.astype(bf), w1.astype(bf),
                             preferred_element_type=jnp.float32) + b1, 0.0)
    h2 = jnp.maximum(jnp.dot(h1.astype(bf), w2.astype(bf),
                             preferred_element_type=jnp.float32) + b2, 0.0)
    pred = jax.nn.sigmoid(jnp.dot(h2.astype(bf), w3.astype(bf),
                                  preferred_element_type=jnp.float32) + b3)
    return pred, h2


if __name__ == "__main__":
    key = jax.random.PRNGKey(0)
    k_x, k_p = jax.random.split(key)

    # Small shapes consistent with the module; B=40 with the auto tile (tb=32)
    # exercises a 2-step grid with a ragged final block (no batch padding).
    B = 40
    x = jax.random.normal(k_x, (B, IN_FEATURES), dtype=jnp.float32)
    params = init_params(k_p)
    prepped = prepare_params(params)   # cast/prep once, outside the hot path

    pred, feature = jax.block_until_ready(network_forward(x, prepped))

    # sanity check against the pure-JAX reference
    ref_pred, ref_feat = _reference(x, params)
    assert pred.shape == (B, NB_CLASSES) and feature.shape == (B, H2)
    assert jnp.allclose(pred, ref_pred, atol=5e-3, rtol=5e-3)
    assert jnp.allclose(feature, ref_feat, atol=5e-3, rtol=5e-3)

    print("KERNEL_OK")
</pallas_src>

<mosaic_0001>
module attributes {stable_mosaic.version = 11 : i64} {
  func.func @_mlp_kernel(%arg0: i32, %arg1: memref<32x189xf32, #tpu.memory_space<vmem>>, %arg2: memref<189x128xbf16, #tpu.memory_space<vmem>>, %arg3: memref<1x128xf32, #tpu.memory_space<vmem>>, %arg4: memref<128x64xbf16, #tpu.memory_space<vmem>>, %arg5: memref<1x64xf32, #tpu.memory_space<vmem>>, %arg6: memref<64x2xbf16, #tpu.memory_space<vmem>>, %arg7: memref<1x2xf32, #tpu.memory_space<vmem>>, %arg8: memref<32x64xf32, #tpu.memory_space<vmem>>, %arg9: memref<32x2xf32, #tpu.memory_space<vmem>>) attributes {dimension_semantics = [#tpu.dimension_semantics<parallel>], iteration_bounds = array<i64: 2>, scalar_prefetch = 0 : i64, scratch_operands = 0 : i64, tpu.core_type = #tpu.core_type<tc>, window_params = [{transform_indices = @transform_0, window_bounds = array<i64: 32, 189>}, {pipeline_mode = #tpu.pipeline_mode<synchronous>, transform_indices = @transform_1, window_bounds = array<i64: 189, 128>}, {pipeline_mode = #tpu.pipeline_mode<synchronous>, transform_indices = @transform_2, window_bounds = array<i64: 1, 128>}, {pipeline_mode = #tpu.pipeline_mode<synchronous>, transform_indices = @transform_3, window_bounds = array<i64: 128, 64>}, {pipeline_mode = #tpu.pipeline_mode<synchronous>, transform_indices = @transform_4, window_bounds = array<i64: 1, 64>}, {pipeline_mode = #tpu.pipeline_mode<synchronous>, transform_indices = @transform_5, window_bounds = array<i64: 64, 2>}, {pipeline_mode = #tpu.pipeline_mode<synchronous>, transform_indices = @transform_6, window_bounds = array<i64: 1, 2>}, {transform_indices = @transform_7, window_bounds = array<i64: 32, 64>}, {transform_indices = @transform_8, window_bounds = array<i64: 32, 2>}]} {
    %c0 = arith.constant 0 : index
    %c0_0 = arith.constant 0 : index
    %0 = vector.load %arg1[%c0, %c0_0] : memref<32x189xf32, #tpu.memory_space<vmem>>, vector<32x189xf32>
    %1 = arith.truncf %0 : vector<32x189xf32> to vector<32x189xbf16>
    %c0_1 = arith.constant 0 : index
    %c0_2 = arith.constant 0 : index
    %2 = vector.load %arg2[%c0_1, %c0_2] : memref<189x128xbf16, #tpu.memory_space<vmem>>, vector<189x128xbf16>
    %cst = arith.constant dense<0.000000e+00> : vector<32x128xf32>
    %3 = tpu.matmul %1, %2, %cst {dimension_numbers = #tpu.dot_dimension_numbers<[1], [0], [0], [1], [0, 0, 1, 1], [], []>} : vector<32x189xbf16>, vector<189x128xbf16>, vector<32x128xf32> -> vector<32x128xf32>
    %c0_3 = arith.constant 0 : index
    %c0_4 = arith.constant 0 : index
    %4 = vector.load %arg3[%c0_3, %c0_4] : memref<1x128xf32, #tpu.memory_space<vmem>>, vector<1x128xf32>
    %5 = vector.broadcast %4 : vector<1x128xf32> to vector<32x128xf32>
    %6 = arith.addf %3, %5 : vector<32x128xf32>
    %cst_5 = arith.constant 0.000000e+00 : f32
    %7 = vector.broadcast %cst_5 : f32 to vector<32x128xf32>
    %8 = arith.maximumf %6, %7 : vector<32x128xf32>
    %9 = arith.truncf %8 : vector<32x128xf32> to vector<32x128xbf16>
    %c0_6 = arith.constant 0 : index
    %c0_7 = arith.constant 0 : index
    %10 = vector.load %arg4[%c0_6, %c0_7] : memref<128x64xbf16, #tpu.memory_space<vmem>>, vector<128x64xbf16>
    %cst_8 = arith.constant dense<0.000000e+00> : vector<32x64xf32>
    %11 = tpu.matmul %9, %10, %cst_8 {dimension_numbers = #tpu.dot_dimension_numbers<[1], [0], [0], [1], [0, 0, 1, 1], [], []>} : vector<32x128xbf16>, vector<128x64xbf16>, vector<32x64xf32> -> vector<32x64xf32>
    %c0_9 = arith.constant 0 : index
    %c0_10 = arith.constant 0 : index
    %12 = vector.load %arg5[%c0_9, %c0_10] : memref<1x64xf32, #tpu.memory_space<vmem>>, vector<1x64xf32>
    %13 = vector.broadcast %12 : vector<1x64xf32> to vector<32x64xf32>
    %14 = arith.addf %11, %13 : vector<32x64xf32>
    %cst_11 = arith.constant 0.000000e+00 : f32
    %15 = vector.broadcast %cst_11 : f32 to vector<32x64xf32>
    %16 = arith.maximumf %14, %15 : vector<32x64xf32>
    %17 = arith.truncf %16 : vector<32x64xf32> to vector<32x64xbf16>
    %c0_12 = arith.constant 0 : index
    %c0_13 = arith.constant 0 : index
    %18 = vector.load %arg6[%c0_12, %c0_13] : memref<64x2xbf16, #tpu.memory_space<vmem>>, vector<64x2xbf16>
    %cst_14 = arith.constant dense<0.000000e+00> : vector<32x2xf32>
    %19 = tpu.matmul %17, %18, %cst_14 {dimension_numbers = #tpu.dot_dimension_numbers<[1], [0], [0], [1], [0, 0, 1, 1], [], []>} : vector<32x64xbf16>, vector<64x2xbf16>, vector<32x2xf32> -> vector<32x2xf32>
    %c0_15 = arith.constant 0 : index
    %c0_16 = arith.constant 0 : index
    %20 = vector.load %arg7[%c0_15, %c0_16] : memref<1x2xf32, #tpu.memory_space<vmem>>, vector<1x2xf32>
    %21 = vector.broadcast %20 : vector<1x2xf32> to vector<32x2xf32>
    %22 = arith.addf %19, %21 : vector<32x2xf32>
    %c0_17 = arith.constant 0 : index
    %c0_18 = arith.constant 0 : index
    %23 = vector.load %arg8[%c0_17, %c0_18] : memref<32x64xf32, #tpu.memory_space<vmem>>, vector<32x64xf32>
    tpu.vector_store %arg8[%c0_17, %c0_18], %16 {strides = array<i32>} : memref<32x64xf32, #tpu.memory_space<vmem>>, vector<32x64xf32>,
    %24 = arith.negf %22 : vector<32x2xf32>
    %25 = math.exp %24 : vector<32x2xf32>
    %cst_19 = arith.constant 1.000000e+00 : f32
    %26 = vector.broadcast %cst_19 : f32 to vector<32x2xf32>
    %27 = arith.addf %26, %25 : vector<32x2xf32>
    %28 = arith.divf %26, %27 : vector<32x2xf32>
    %c0_20 = arith.constant 0 : index
    %c0_21 = arith.constant 0 : index
    %29 = vector.load %arg9[%c0_20, %c0_21] : memref<32x2xf32, #tpu.memory_space<vmem>>, vector<32x2xf32>
    tpu.vector_store %arg9[%c0_20, %c0_21], %28 {strides = array<i32>} : memref<32x2xf32, #tpu.memory_space<vmem>>, vector<32x2xf32>,
    return
  }
  func.func @transform_0(%arg0: i32) -> (i32, i32) {
    %c0_i32 = arith.constant 0 : i32
    %c0_i32_0 = arith.constant 0 : i32
    return %arg0, %c0_i32 : i32, i32
  }
  func.func @transform_1(%arg0: i32) -> (i32, i32) {
    %c0_i32 = arith.constant 0 : i32
    %c0_i32_0 = arith.constant 0 : i32
    %c0_i32_1 = arith.constant 0 : i32
    return %c0_i32, %c0_i32_0 : i32, i32
  }
  func.func @transform_2(%arg0: i32) -> (i32, i32) {
    %c0_i32 = arith.constant 0 : i32
    %c0_i32_0 = arith.constant 0 : i32
    %c0_i32_1 = arith.constant 0 : i32
    return %c0_i32, %c0_i32_0 : i32, i32
  }
  func.func @transform_3(%arg0: i32) -> (i32, i32) {
    %c0_i32 = arith.constant 0 : i32
    %c0_i32_0 = arith.constant 0 : i32
    %c0_i32_1 = arith.constant 0 : i32
    return %c0_i32, %c0_i32_0 : i32, i32
  }
  func.func @transform_4(%arg0: i32) -> (i32, i32) {
    %c0_i32 = arith.constant 0 : i32
    %c0_i32_0 = arith.constant 0 : i32
    %c0_i32_1 = arith.constant 0 : i32
    return %c0_i32, %c0_i32_0 : i32, i32
  }
  func.func @transform_5(%arg0: i32) -> (i32, i32) {
    %c0_i32 = arith.constant 0 : i32
    %c0_i32_0 = arith.constant 0 : i32
    %c0_i32_1 = arith.constant 0 : i32
    return %c0_i32, %c0_i32_0 : i32, i32
  }
  func.func @transform_6(%arg0: i32) -> (i32, i32) {
    %c0_i32 = arith.constant 0 : i32
    %c0_i32_0 = arith.constant 0 : i32
    %c0_i32_1 = arith.constant 0 : i32
    return %c0_i32, %c0_i32_0 : i32, i32
  }
  func.func @transform_7(%arg0: i32) -> (i32, i32) {
    %c0_i32 = arith.constant 0 : i32
    %c0_i32_0 = arith.constant 0 : i32
    return %arg0, %c0_i32 : i32, i32
  }
  func.func @transform_8(%arg0: i32) -> (i32, i32) {
    %c0_i32 = arith.constant 0 : i32
    %c0_i32_0 = arith.constant 0 : i32
    return %arg0, %c0_i32 : i32, i32
  }
}

</mosaic_0001>

<llo_original>
// kernel: network_forward.1
$region0: #{network_forward.1}
  #allocation0 [shape = 'u32[]', space=smem, size = 0x4, offset = 0x4, fixed_abs, tag = 'smem constant byte address 0x4 - core index']
  #allocation1 [shape = 'u32[72,128]{1,0:T(1,128)}', space=vmem, size = 0x9000, scoped, tag = 'internal scratch']
  %s0 = inlined_call_operand.hbm [shape: f32[40,189], index: 0, kind: input, shape index: {}]
  %s1 = inlined_call_operand.vmem [shape: bf16[189,128], index: 1, kind: input, shape index: {}]
  %s2 = inlined_call_operand.vmem [shape: f32[1,128], index: 2, kind: input, shape index: {}]
  %s3 = inlined_call_operand.vmem [shape: bf16[128,64], index: 3, kind: input, shape index: {}]
  %s4 = inlined_call_operand.vmem [shape: f32[1,64], index: 4, kind: input, shape index: {}]
  %s5 = inlined_call_operand.vmem [shape: bf16[64,2], index: 5, kind: input, shape index: {}]
  %s6 = inlined_call_operand.vmem [shape: f32[1,2], index: 6, kind: input, shape index: {}]
  %s7 = inlined_call_operand.hbm [shape: f32[40,64], index: 7, kind: output, shape index: {0}]
  %s8 = inlined_call_operand.vmem [shape: f32[40,2], index: 8, kind: output, shape index: {1}]
  %9 = xla_tuple %s7, %s8
  %s10 = sld [smem:[#allocation0]]
  $region121: #{network_forward.1} parent=0
    _
  %s12 = ssub.s32 1, %s10
  %s13 = scalar_select 0, %s12, %s10
  $region1: #{network_forward.1} parent=0
    #allocation2 [shape = 'u8[65536]{0}', space=vmem, size = 0x10000, scoped, tag = 'input window, operand 0']
    #allocation3 [shape = 's32[2]{0}', space=sflag, size = 0x8, scoped, tag = 'scoped memory for network_forward.1']
    #allocation4 [shape = 's32[2]{0}', space=sflag, size = 0x8, scoped, tag = 'scoped memory for network_forward.1']
    #allocation5 [shape = 'u8[32768]{0}', space=vmem, size = 0x8000, scoped, tag = 'output window, operand 0']
    #allocation6 [shape = 'u8[32768]{0}', space=vmem, size = 0x8000, scoped, tag = 'output window, operand 1']
    %14 = vsyncpa [#allocation3], 0
    %s15 = scalar_lea.sflag [#allocation3], 1
    %16 = vsyncpa %s15, 0
    %17 = vsyncpa [#allocation4], 0
    %s18 = scalar_lea.sflag [#allocation4], 1
    %19 = vsyncpa %s18, 0
    loop: start=0, step=1, limit=4
    $region2: #{network_forward.1} parent=1 // loop_pre_header
      _
    $region3: #{network_forward.1} parent=1 // loop_header
      %s21 = sphi 0, %s25
      %p22 = scmp.ge.s32.totalorder %s21, 4
      %s31 = sphi 0, %s33
      %s34 = sphi 0, %s31
      %s35 = sphi 0, %s34
      %s51 = sphi 0, %s35
      %s55 = sphi 0, %s55
      %s57 = sphi 0, %s55
      %s58 = sphi 0, %s57
      %s72 = sphi 0, %s58
      %s76 = sphi 0, %s76
      %s78 = sphi 0, %s76
      %s79 = sphi 0, %s78
      %s93 = sphi 0, %s79
      %s97 = sphi 0, %s97
      %s99 = sphi 0, %s97
      %s100 = sphi 0, %s99
      %s114 = sphi 0, %s100
      %s118 = sphi 0, %s118
      %s120 = sphi 0, %s118
      %s121 = sphi 0, %s120
      %s135 = sphi 0, %s121
      %s139 = sphi 0, %s139
      %s141 = sphi 0, %s139
      %s142 = sphi 0, %s141
      %s156 = sphi 0, %s142
      %s160 = sphi 0, %s160
      %s162 = sphi 0, %s160
      %s163 = sphi 0, %s162
      %s177 = sphi 0, %s163
      %s183 = sphi 0, %s185
      %s186 = sphi 0, %s183
      %s187 = sphi 0, %s186
      %s203 = sphi 0, %s187
      %s209 = sphi 0, %s211
      %s212 = sphi 0, %s209
      %s213 = sphi 0, %s212
      %s229 = sphi 0, %s213
    $region4: #{network_forward.1} parent=1 // loop_header_branch
      %24 = sbr.rel (%p22) target = $region8
    $region5: #{network_forward.1} parent=1 // loop_body
      %s26 = ssub.s32 %s21, 1
      %s27 = ssub.s32 %s21, 2
      %s28 = sadd.s32 %s21, 1
      %s29 = ssub.s32 %s21, %s28
      %p30 = scmp.eq.s32.totalorder %s29, 0
      %s32 = sadd.s32 %s31, 1
      %s33 = scalar_select %p30, %s31, %s32
      %p36 = pneg %p30
      %p37 = scmp.eq.s32.totalorder %s21, 1
      %p38 = por %p36, %p37
      %p39 = scmp.ne.s32.totalorder %s31, %s34
      %p40 = scmp.eq.s32.totalorder %s21, 0
      %p41 = por %p39, %p40
      %p42 = scmp.ne.s32.totalorder %s31, %s34
      %p43 = scmp.eq.s32.totalorder %s26, 1
      %p44 = por %p42, %p43
      %p45 = scmp.ne.s32.totalorder %s34, %s35
      %p46 = scmp.eq.s32.totalorder %s26, 0
      %p47 = por %p45, %p46
      %p48 = scmp.ne.s32.totalorder %s34, %s35
      %p49 = scmp.eq.s32.totalorder %s27, 1
      %p50 = por %p48, %p49
      %p52 = scmp.ne.s32.totalorder %s35, %s51
      %p53 = scmp.eq.s32.totalorder %s27, 0
      %p54 = por %p52, %p53
      %s56 = sadd.s32 %s55, 1
      %p59 = scmp.eq.s32.totalorder %s21, 1
      %p60 = scmp.ne.s32.totalorder %s55, %s57
      %p61 = scmp.eq.s32.totalorder %s21, 0
      %p62 = por %p60, %p61
      %p63 = scmp.ne.s32.totalorder %s55, %s57
      %p64 = scmp.eq.s32.totalorder %s26, 1
      %p65 = por %p63, %p64
      %p66 = scmp.ne.s32.totalorder %s57, %s58
      %p67 = scmp.eq.s32.totalorder %s26, 0
      %p68 = por %p66, %p67
      %p69 = scmp.ne.s32.totalorder %s57, %s58
      %p70 = scmp.eq.s32.totalorder %s27, 1
      %p71 = por %p69, %p70
      %p73 = scmp.ne.s32.totalorder %s58, %s72
      %p74 = scmp.eq.s32.totalorder %s27, 0
      %p75 = por %p73, %p74
      %s77 = sadd.s32 %s76, 1
      %p80 = scmp.eq.s32.totalorder %s21, 1
      %p81 = scmp.ne.s32.totalorder %s76, %s78
      %p82 = scmp.eq.s32.totalorder %s21, 0
      %p83 = por %p81, %p82
      %p84 = scmp.ne.s32.totalorder %s76, %s78
      %p85 = scmp.eq.s32.totalorder %s26, 1
      %p86 = por %p84, %p85
      %p87 = scmp.ne.s32.totalorder %s78, %s79
      %p88 = scmp.eq.s32.totalorder %s26, 0
      %p89 = por %p87, %p88
      %p90 = scmp.ne.s32.totalorder %s78, %s79
      %p91 = scmp.eq.s32.totalorder %s27, 1
      %p92 = por %p90, %p91
      %p94 = scmp.ne.s32.totalorder %s79, %s93
      %p95 = scmp.eq.s32.totalorder %s27, 0
      %p96 = por %p94, %p95
      %s98 = sadd.s32 %s97, 1
      %p101 = scmp.eq.s32.totalorder %s21, 1
      %p102 = scmp.ne.s32.totalorder %s97, %s99
      %p103 = scmp.eq.s32.totalorder %s21, 0
      %p104 = por %p102, %p103
      %p105 = scmp.ne.s32.totalorder %s97, %s99
      %p106 = scmp.eq.s32.totalorder %s26, 1
      %p107 = por %p105, %p106
      %p108 = scmp.ne.s32.totalorder %s99, %s100
      %p109 = scmp.eq.s32.totalorder %s26, 0
      %p110 = por %p108, %p109
      %p111 = scmp.ne.s32.totalorder %s99, %s100
      %p112 = scmp.eq.s32.totalorder %s27, 1
      %p113 = por %p111, %p112
      %p115 = scmp.ne.s32.totalorder %s100, %s114
      %p116 = scmp.eq.s32.totalorder %s27, 0
      %p117 = por %p115, %p116
      %s119 = sadd.s32 %s118, 1
      %p122 = scmp.eq.s32.totalorder %s21, 1
      %p123 = scmp.ne.s32.totalorder %s118, %s120
      %p124 = scmp.eq.s32.totalorder %s21, 0
      %p125 = por %p123, %p124
      %p126 = scmp.ne.s32.totalorder %s118, %s120
      %p127 = scmp.eq.s32.totalorder %s26, 1
      %p128 = por %p126, %p127
      %p129 = scmp.ne.s32.totalorder %s120, %s121
      %p130 = scmp.eq.s32.totalorder %s26, 0
      %p131 = por %p129, %p130
      %p132 = scmp.ne.s32.totalorder %s120, %s121
      %p133 = scmp.eq.s32.totalorder %s27, 1
      %p134 = por %p132, %p133
      %p136 = scmp.ne.s32.totalorder %s121, %s135
      %p137 = scmp.eq.s32.totalorder %s27, 0
      %p138 = por %p136, %p137
      %s140 = sadd.s32 %s139, 1
      %p143 = scmp.eq.s32.totalorder %s21, 1
      %p144 = scmp.ne.s32.totalorder %s139, %s141
      %p145 = scmp.eq.s32.totalorder %s21, 0
      %p146 = por %p144, %p145
      %p147 = scmp.ne.s32.totalorder %s139, %s141
      %p148 = scmp.eq.s32.totalorder %s26, 1
      %p149 = por %p147, %p148
      %p150 = scmp.ne.s32.totalorder %s141, %s142
      %p151 = scmp.eq.s32.totalorder %s26, 0
      %p152 = por %p150, %p151
      %p153 = scmp.ne.s32.totalorder %s141, %s142
      %p154 = scmp.eq.s32.totalorder %s27, 1
      %p155 = por %p153, %p154
      %p157 = scmp.ne.s32.totalorder %s142, %s156
      %p158 = scmp.eq.s32.totalorder %s27, 0
      %p159 = por %p157, %p158
      %s161 = sadd.s32 %s160, 1
      %p164 = scmp.eq.s32.totalorder %s21, 1
      %p165 = scmp.ne.s32.totalorder %s160, %s162
      %p166 = scmp.eq.s32.totalorder %s21, 0
      %p167 = por %p165, %p166
      %p168 = scmp.ne.s32.totalorder %s160, %s162
      %p169 = scmp.eq.s32.totalorder %s26, 1
      %p170 = por %p168, %p169
      %p171 = scmp.ne.s32.totalorder %s162, %s163
      %p172 = scmp.eq.s32.totalorder %s26, 0
      %p173 = por %p171, %p172
      %p174 = scmp.ne.s32.totalorder %s162, %s163
      %p175 = scmp.eq.s32.totalorder %s27, 1
      %p176 = por %p174, %p175
      %p178 = scmp.ne.s32.totalorder %s163, %s177
      %p179 = scmp.eq.s32.totalorder %s27, 0
      %p180 = por %p178, %p179
      %s181 = ssub.s32 %s21, %s28
      %p182 = scmp.eq.s32.totalorder %s181, 0
      %s184 = sadd.s32 %s183, 1
      %s185 = scalar_select %p182, %s183, %s184
      %p188 = pneg %p182
      %p189 = scmp.eq.s32.totalorder %s21, 1
      %p190 = por %p188, %p189
      %p191 = scmp.ne.s32.totalorder %s183, %s186
      %p192 = scmp.eq.s32.totalorder %s21, 0
      %p193 = por %p191, %p192
      %p194 = scmp.ne.s32.totalorder %s183, %s186
      %p195 = scmp.eq.s32.totalorder %s26, 1
      %p196 = por %p194, %p195
      %p197 = scmp.ne.s32.totalorder %s186, %s187
      %p198 = scmp.eq.s32.totalorder %s26, 0
      %p199 = por %p197, %p198
      %p200 = scmp.ne.s32.totalorder %s186, %s187
      %p201 = scmp.eq.s32.totalorder %s27, 1
      %p202 = por %p200, %p201
      %p204 = scmp.ne.s32.totalorder %s187, %s203
      %p205 = scmp.eq.s32.totalorder %s27, 0
      %p206 = por %p204, %p205
      %s207 = ssub.s32 %s21, %s28
      %p208 = scmp.eq.s32.totalorder %s207, 0
      %s210 = sadd.s32 %s209, 1
      %s211 = scalar_select %p208, %s209, %s210
      %p214 = pneg %p208
      %p215 = scmp.eq.s32.totalorder %s21, 1
      %p216 = por %p214, %p215
      %p217 = scmp.ne.s32.totalorder %s209, %s212
      %p218 = scmp.eq.s32.totalorder %s21, 0
      %p219 = por %p217, %p218
      %p220 = scmp.ne.s32.totalorder %s209, %s212
      %p221 = scmp.eq.s32.totalorder %s26, 1
      %p222 = por %p220, %p221
      %p223 = scmp.ne.s32.totalorder %s212, %s213
      %p224 = scmp.eq.s32.totalorder %s26, 0
      %p225 = por %p223, %p224
      %p226 = scmp.ne.s32.totalorder %s212, %s213
      %p227 = scmp.eq.s32.totalorder %s27, 1
      %p228 = por %p226, %p227
      %p230 = scmp.ne.s32.totalorder %s213, %s229
      %p231 = scmp.eq.s32.totalorder %s27, 0
      %p232 = por %p230, %p231
      %p233 = scmp.le.s32.totalorder 1, %s21
      %p234 = scmp.lt.s32.totalorder %s21, 3
      %p235 = pnand %p233, %p234
      %p236 = pneg %p235
      // Predicated region
      $region9: #{network_forward.1} parent=5 // pred_check
        _
      $region10: #{network_forward.1} parent=5 // pred_check_branch
        %238 = sbr.rel (%p235) target = $region12
      $region11: #{network_forward.1} parent=5 // pred_region
        %s239 = ssub.s32 %s21, 1
        // Predicated region
        $region13: #{network_forward.1} parent=11 // pred_check
          %p240 = pneg %p68
        $region14: #{network_forward.1} parent=11 // pred_check_branch
          %242 = sbr.rel (%p240) target = $region16
        $region15: #{network_forward.1} parent=11 // pred_region
          _
        $region16: #{network_forward.1} parent=11 // pred_fallthru
          _
        // Predicated region
        $region17: #{network_forward.1} parent=11 // pred_check
          %p243 = pneg %p89
        $region18: #{network_forward.1} parent=11 // pred_check_branch
          %245 = sbr.rel (%p243) target = $region20
        $region19: #{network_forward.1} parent=11 // pred_region
          _
        $region20: #{network_forward.1} parent=11 // pred_fallthru
          _
        // Predicated region
        $region21: #{network_forward.1} parent=11 // pred_check
          %p246 = pneg %p110
        $region22: #{network_forward.1} parent=11 // pred_check_branch
          %248 = sbr.rel (%p246) target = $region24
        $region23: #{network_forward.1} parent=11 // pred_region
          _
        $region24: #{network_forward.1} parent=11 // pred_fallthru
          _
        // Predicated region
        $region25: #{network_forward.1} parent=11 // pred_check
          %p249 = pneg %p131
        $region26: #{network_forward.1} parent=11 // pred_check_branch
          %251 = sbr.rel (%p249) target = $region28
        $region27: #{network_forward.1} parent=11 // pred_region
          _
        $region28: #{network_forward.1} parent=11 // pred_fallthru
          _
        // Predicated region
        $region29: #{network_forward.1} parent=11 // pred_check
          %p252 = pneg %p152
        $region30: #{network_forward.1} parent=11 // pred_check_branch
          %254 = sbr.rel (%p252) target = $region32
        $region31: #{network_forward.1} parent=11 // pred_region
          _
        $region32: #{network_forward.1} parent=11 // pred_fallthru
          _
        // Predicated region
        $region33: #{network_forward.1} parent=11 // pred_check
          %p255 = pneg %p173
        $region34: #{network_forward.1} parent=11 // pred_check_branch
          %257 = sbr.rel (%p255) target = $region36
        $region35: #{network_forward.1} parent=11 // pred_region
          _
        $region36: #{network_forward.1} parent=11 // pred_fallthru
          _
      $region12: #{network_forward.1} parent=5 // pred_fallthru
        _
      %p258 = scmp.lt.s32.totalorder %s21, 2
      // Predicated region
      $region37: #{network_forward.1} parent=5 // pred_check
        %p259 = pneg %p258
      $region38: #{network_forward.1} parent=5 // pred_check_branch
        %261 = sbr.rel (%p259) target = $region40
      $region39: #{network_forward.1} parent=5 // pred_region
        // Predicated region
        $region41: #{network_forward.1} parent=39 // pred_check
          %p262 = pneg %p41
        $region42: #{network_forward.1} parent=39 // pred_check_branch
          %264 = sbr.rel (%p262) target = $region44
        $region43: #{network_forward.1} parent=39 // pred_region
          %s265 = sand.u32 %s31, 1
          %s266 = scalar_lea.sflag [#allocation3], %s265
          %s267 = sand.u32 %s31, 1
          %s268 = smul.addr %s267, 64
          %s269 = scalar_lea.vmem [#allocation2], %s268
          %s270 = smul.u32 4, %s21
          %s271 = ssub.s32 5, %s270
          %p272 = scmp.lt.s32.totalorder %s271, 4
          %s273 = scalar_select %p272, %s271, 4
          %s274 = smul.u32 8, %s273
          %s275 = smul.u32 %s274, 2
          %s276 = ssub.s32 64, %s275
          %s277 = sshll.u32 %s276, 4
          %278 = vsyncadd %s266, %s277
          %p279 = scmp.ne.s32.totalorder 0, %s275
          %s280 = smul.addr %s270, 2
          %s281 = smul.addr %s280, 8
          %s282 = scalar_lea.hbm %s0, %s281
          %s283 = smul.u32 16, %s273
          %s284 = sshll.u32 %s282, 4
          %s285 = int_to_ptr.hbm [resolvable:$true] %s284
          %s286 = sshll.u32 %s269, 4
          %s287 = int_to_ptr.vmem [resolvable:$true] %s286
          %s288 = sshll.u32 %s283, 4
          %292 = dma.hbm_to_vmem [thread:$0]  (%p279), %s285, %s288, %s287, %s266, 256, 256, 16
        $region44: #{network_forward.1} parent=39 // pred_fallthru
          _
      $region40: #{network_forward.1} parent=5 // pred_fallthru
        _
      %p293 = scmp.le.s32.totalorder 1, %s21
      %p294 = scmp.lt.s32.totalorder %s21, 3
      %p295 = pnand %p293, %p294
      %p296 = pneg %p295
      // Predicated region
      $region45: #{network_forward.1} parent=5 // pred_check
        _
      $region46: #{network_forward.1} parent=5 // pred_check_branch
        %298 = sbr.rel (%p295) target = $region48
      $region47: #{network_forward.1} parent=5 // pred_region
        %s299 = ssub.s32 %s21, 1
        %s300 = sand.u32 %s34, 1
        %s301 = scalar_lea.sflag [#allocation3], %s300
        %s302 = sand.u32 %s34, 1
        %s303 = smul.addr %s302, 64
        %s304 = scalar_lea.vmem [#allocation2], %s303
        // Predicated region
        $region49: #{network_forward.1} parent=47 // pred_check
          %p305 = pneg %p47
        $region50: #{network_forward.1} parent=47 // pred_check_branch
          %307 = sbr.rel (%p305) target = $region52
        $region51: #{network_forward.1} parent=47 // pred_region
          %309 = dma.done %s301, 1024
        $region52: #{network_forward.1} parent=47 // pred_fallthru
          _
        %s310 = sand.u32 %s34, 1
        %s311 = scalar_lea.sflag [#allocation3], %s310
        %s312 = sand.u32 %s34, 1
        %s313 = smul.addr %s312, 64
        %s314 = scalar_lea.vmem [#allocation2], %s313
        %p315 = pneg %p47
        %p316 = pneg %p44
        %p317 = pneg %p68
        %p318 = pneg %p65
        %p319 = pneg %p89
        %p320 = pneg %p86
        %p321 = pneg %p110
        %p322 = pneg %p107
        %p323 = pneg %p131
        %p324 = pneg %p128
        %p325 = pneg %p152
        %p326 = pneg %p149
        %p327 = pneg %p173
        %p328 = pneg %p170
        %p329 = pneg %p199
        %p330 = pneg %p196
        %s331 = sand.u32 %s186, 1
        %s332 = scalar_lea.sflag [#allocation4], %s331
        %s333 = sand.u32 %s186, 1
        %s334 = smul.addr %s333, 32
        %s335 = scalar_lea.vmem [#allocation5], %s334
        %p336 = pneg %p225
        %p337 = pneg %p222
        %s338 = sand.u32 %s212, 1
        %s339 = sand.u32 %s212, 1
        %s340 = smul.addr %s339, 32
        %s341 = scalar_lea.vmem [#allocation6], %s340
        %s342 = smul.u32 4, %s26
        %s343 = ssub.s32 5, %s342
        %p344 = scmp.lt.s32.totalorder %s343, 4
        %s345 = scalar_select %p344, %s343, 4
        %s346 = smul.u32 8, %s345
        %s347 = smul.u32 %s346, 2
        %s348 = smul.u32 4, %s26
        %s349 = ssub.s32 5, %s348
        %p350 = scmp.lt.s32.totalorder %s349, 4
        %s351 = scalar_select %p350, %s349, 4
        %s352 = smul.u32 8, %s351
        %s353 = smul.u32 4, %s26
        %s354 = ssub.s32 5, %s353
        %p355 = scmp.lt.s32.totalorder %s354, 4
        %s356 = scalar_select %p355, %s354, 4
        %s357 = smul.u32 8, %s356
        %v359 = vld [vmem:[%s304] sm:$0xff]
        %v360 = vld [vmem:[%s304 + $0x8] sm:$0xff]
        %v361 = vld [vmem:[%s304 + $0x10] sm:$0xff]
        %v362 = vld [vmem:[%s304 + $0x18] sm:$0xff]
        %v363 = vld [vmem:[%s304 + $0x20] sm:$0xff]
        %v364 = vld [vmem:[%s304 + $0x28] sm:$0xff]
        %v365 = vld [vmem:[%s304 + $0x30] sm:$0xff]
        %v366 = vld [vmem:[%s304 + $0x38] sm:$0xff]
        %v367 = vpack.c.bf16 %v361, %v359
        %v368 = vpack.c.bf16 %v362, %v360
        %v369 = vpack.c.bf16 %v365, %v363
        %v370 = vpack.c.bf16 %v366, %v364
        %v371 = vld [vmem:[%s1] sm:$0xf]
        %v372 = vld [vmem:[%s1 + $0x4] sm:$0xf]
        %v373 = vld [vmem:[%s1 + $0x8] sm:$0xf]
        %v374 = vld [vmem:[%s1 + $0xc] sm:$0xf]
        %v375 = vld [vmem:[%s1 + $0x10] sm:$0xf]
        %v376 = vld [vmem:[%s1 + $0x14] sm:$0xf]
        %v377 = vld [vmem:[%s1 + $0x18] sm:$0xf]
        %v378 = vld [vmem:[%s1 + $0x1c] sm:$0xf]
        %v379 = vld [vmem:[%s1 + $0x20] sm:$0xf]
        %v380 = vld [vmem:[%s1 + $0x24] sm:$0xf]
        %v381 = vld [vmem:[%s1 + $0x28] sm:$0xf]
        %v382 = vld [vmem:[%s1 + $0x2c] sm:$0xf]
        %v383 = vld [vmem:[%s1 + $0x30] sm:$0xf]
        %v384 = vld [vmem:[%s1 + $0x34] sm:$0xf]
        %v385 = vld [vmem:[%s1 + $0x38] sm:$0xf]
        %v386 = vld [vmem:[%s1 + $0x3c] sm:$0xf]
        %v387 = vld [vmem:[%s1 + $0x40] sm:$0xf]
        %v388 = vld [vmem:[%s1 + $0x44] sm:$0xf]
        %v389 = vld [vmem:[%s1 + $0x48] sm:$0xf]
        %v390 = vld [vmem:[%s1 + $0x4c] sm:$0xf]
        %v391 = vld [vmem:[%s1 + $0x50] sm:$0xf]
        %v392 = vld [vmem:[%s1 + $0x54] sm:$0xf]
        %v393 = vld [vmem:[%s1 + $0x58] sm:$0xf]
        %v394 = vld [vmem:[%s1 + $0x5c] sm:$0x7]
        %v395 = vld [vmem:[%s2] sm:$0x1]
        %v397 = vperm.slane %v395, 0
        %v423 = vunpack.c.l.b16 %v371
        %v424 = vunpack.c.l.b16 %v372
        %v425 = vunpack.c.l.b16 %v373
        %v426 = vunpack.c.l.b16 %v374
        %v427 = vunpack.c.l.b16 %v375
        %v428 = vunpack.c.l.b16 %v376
        %v429 = vunpack.c.l.b16 %v377
        %v430 = vunpack.c.l.b16 %v378
        %v431 = vunpack.c.l.b16 %v379
        %v432 = vunpack.c.l.b16 %v380
        %v433 = vunpack.c.l.b16 %v381
        %v434 = vunpack.c.l.b16 %v382
        %v435 = vunpack.c.l.b16 %v383
        %v436 = vunpack.c.l.b16 %v384
        %v437 = vunpack.c.l.b16 %v385
        %v438 = vunpack.c.l.b16 %v386
        %v439 = vunpack.c.l.b16 %v387
        %v440 = vunpack.c.l.b16 %v388
        %v441 = vunpack.c.l.b16 %v389
        %v442 = vunpack.c.l.b16 %v390
        %v443 = vunpack.c.l.b16 %v391
        %v444 = vunpack.c.l.b16 %v392
        %v445 = vunpack.c.l.b16 %v393
        %v446 = vunpack.c.l.b16 %v394
        %v447 = vpack.c.b16 %v424, %v423
        %v448 = vpack.c.b16 %v426, %v425
        %v449 = vpack.c.b16 %v428, %v427
        %v450 = vpack.c.b16 %v430, %v429
        %v451 = vpack.c.b16 %v432, %v431
        %v452 = vpack.c.b16 %v434, %v433
        %v453 = vpack.c.b16 %v436, %v435
        %v454 = vpack.c.b16 %v438, %v437
        %v455 = vpack.c.b16 %v440, %v439
        %v456 = vpack.c.b16 %v442, %v441
        %v457 = vpack.c.b16 %v444, %v443
        %v458 = vpack.c.b16 %v446, %v445
        %vm470 = vcmask 498688
        %v472 = vsel %vm470, %v368, 0
        %v475 = vsel %vm470, %v370, 0
        %vm477 = vcmask 1045504
        %vm478 = vcmask 1046528
        %v479 = vsel %vm477, 4294967295, 65535
        %v480 = vsel %vm478, %v479, 0
        %v482 = vand.u32 %v458, %v480
        %484 = vmatpush.bf16.msra.mxu0 %v454
        %485 = vmatpush.bf16.msra.mxu0 %v453
        %486 = vmatpush.bf16.msra.mxu0 %v452
        %487 = vmatpush.bf16.msra.mxu0 %v451
        %488 = vmatpush.bf16.msra.mxu0 %v450
        %489 = vmatpush.bf16.msra.mxu0 %v449
        %490 = vmatpush.bf16.msra.mxu0 %v448
        %491 = vmatpush.bf16.msra.mxu0 %v447
        %492 = vmatmul.bf16.gmra.mxu0 %v367
        %v493 = vpop.f32.mrf.mxu0
        %v494 = vadd.f32 %v397, %v493
        %v495 = vpop.f32.mrf.mxu0
        %v496 = vadd.f32 %v397, %v495
        %497 = vmatmul.bf16.gmra.mxu0 %v369
        %v498 = vpop.f32.mrf.mxu0
        %v499 = vadd.f32 %v397, %v498
        %v500 = vpop.f32.mrf.mxu0
        %v501 = vadd.f32 %v397, %v500
        %502 = vdwg.mxu0
        %503 = vmatpush.bf16.msra.mxu0 0
        %504 = vmatpush.bf16.msra.mxu0 0
        %505 = vmatpush.bf16.msra.mxu0 0
        %506 = vmatpush.bf16.msra.mxu0 0
        %507 = vmatpush.bf16.msra.mxu0 %v482
        %508 = vmatpush.bf16.msra.mxu0 %v457
        %509 = vmatpush.bf16.msra.mxu0 %v456
        %510 = vmatpush.bf16.msra.mxu0 %v455
        %511 = vmatmul.bf16.gmra.mxu0 %v472
        %v512 = vpop.f32.mrf.mxu0
        %v513 = vadd.f32 %v494, %v512
        %v514 = vpop.f32.mrf.mxu0
        %v515 = vadd.f32 %v496, %v514
        %516 = vmatmul.bf16.gmra.mxu0 %v475
        %v517 = vpop.f32.mrf.mxu0
        %v518 = vadd.f32 %v499, %v517
        %v519 = vpop.f32.mrf.mxu0
        %v520 = vadd.f32 %v501, %v519
        %521 = vdwg.mxu0
        %v522 = vmax.f32 %v513, 0.0
        %v523 = vmax.f32 %v515, 0.0
        %v524 = vmax.f32 %v518, 0.0
        %v525 = vmax.f32 %v520, 0.0
        %v526 = vpack.c.bf16 %v523, %v522
        %v527 = vpack.c.bf16 %v525, %v524
        %v528 = vld [vmem:[%s3] sm:$0xf]
        %v529 = vld [vmem:[%s3 + $0x4] sm:$0xf]
        %v530 = vld [vmem:[%s3 + $0x8] sm:$0xf]
        %v531 = vld [vmem:[%s3 + $0xc] sm:$0xf]
        %v532 = vld [vmem:[%s3 + $0x10] sm:$0xf]
        %v533 = vld [vmem:[%s3 + $0x14] sm:$0xf]
        %v534 = vld [vmem:[%s3 + $0x18] sm:$0xf]
        %v535 = vld [vmem:[%s3 + $0x1c] sm:$0xf]
        %v536 = vld [vmem:[%s3 + $0x20] sm:$0xf]
        %v537 = vld [vmem:[%s3 + $0x24] sm:$0xf]
        %v538 = vld [vmem:[%s3 + $0x28] sm:$0xf]
        %v539 = vld [vmem:[%s3 + $0x2c] sm:$0xf]
        %v540 = vld [vmem:[%s3 + $0x30] sm:$0xf]
        %v541 = vld [vmem:[%s3 + $0x34] sm:$0xf]
        %v542 = vld [vmem:[%s3 + $0x38] sm:$0xf]
        %v543 = vld [vmem:[%s3 + $0x3c] sm:$0xf]
        %v544 = vld [vmem:[%s4] sm:$0x1]
        %v546 = vperm.slane %v544, 0
        %v564 = vunpack.c.l.b16 %v528
        %v565 = vunpack.c.l.b16 %v529
        %v566 = vunpack.c.l.b16 %v530
        %v567 = vunpack.c.l.b16 %v531
        %v568 = vunpack.c.l.b16 %v532
        %v569 = vunpack.c.l.b16 %v533
        %v570 = vunpack.c.l.b16 %v534
        %v571 = vunpack.c.l.b16 %v535
        %v572 = vunpack.c.l.b16 %v536
        %v573 = vunpack.c.l.b16 %v537
        %v574 = vunpack.c.l.b16 %v538
        %v575 = vunpack.c.l.b16 %v539
        %v576 = vunpack.c.l.b16 %v540
        %v577 = vunpack.c.l.b16 %v541
        %v578 = vunpack.c.l.b16 %v542
        %v579 = vunpack.c.l.b16 %v543
        %v580 = vpack.c.b16 %v565, %v564
        %v581 = vpack.c.b16 %v567, %v566
        %v582 = vpack.c.b16 %v569, %v568
        %v583 = vpack.c.b16 %v571, %v570
        %v584 = vpack.c.b16 %v573, %v572
        %v585 = vpack.c.b16 %v575, %v574
        %v586 = vpack.c.b16 %v577, %v576
        %v587 = vpack.c.b16 %v579, %v578
        %596 = vmatpush.bf16.msra.mxu0 %v587
        %597 = vmatpush.bf16.msra.mxu0 %v586
        %598 = vmatpush.bf16.msra.mxu0 %v585
        %599 = vmatpush.bf16.msra.mxu0 %v584
        %600 = vmatpush.bf16.msra.mxu0 %v583
        %601 = vmatpush.bf16.msra.mxu0 %v582
        %602 = vmatpush.bf16.msra.mxu0 %v581
        %603 = vmatpush.bf16.msra.mxu0 %v580
        %604 = vmatmul.bf16.gmra.mxu0 %v526
        %v605 = vpop.f32.mrf.mxu0
        %v606 = vadd.f32 %v546, %v605
        %v607 = vpop.f32.mrf.mxu0
        %v608 = vadd.f32 %v546, %v607
        %609 = vmatmul.bf16.gmra.mxu0 %v527
        %v610 = vpop.f32.mrf.mxu0
        %v611 = vadd.f32 %v546, %v610
        %v612 = vpop.f32.mrf.mxu0
        %v613 = vadd.f32 %v546, %v612
        %614 = vdwg.mxu0
        %v615 = vmax.f32 %v606, 0.0
        %v616 = vmax.f32 %v608, 0.0
        %v617 = vmax.f32 %v611, 0.0
        %v618 = vmax.f32 %v613, 0.0
        %v619 = vpack.c.bf16 %v616, %v615
        %v620 = vpack.c.bf16 %v618, %v617
        %v621 = vld [vmem:[%s5] sm:$0xf]
        %v622 = vld [vmem:[%s5 + $0x4] sm:$0xf]
        %v623 = vld [vmem:[%s5 + $0x8] sm:$0xf]
        %v624 = vld [vmem:[%s5 + $0xc] sm:$0xf]
        %v625 = vld [vmem:[%s5 + $0x10] sm:$0xf]
        %v626 = vld [vmem:[%s5 + $0x14] sm:$0xf]
        %v627 = vld [vmem:[%s5 + $0x18] sm:$0xf]
        %v628 = vld [vmem:[%s5 + $0x1c] sm:$0xf]
        %v629 = vld [vmem:[%s6] sm:$0x1]
        %v631 = vperm.slane %v629, 0
        %v641 = vunpack.c.l.b16 %v621
        %v642 = vunpack.c.l.b16 %v622
        %v643 = vunpack.c.l.b16 %v623
        %v644 = vunpack.c.l.b16 %v624
        %v645 = vunpack.c.l.b16 %v625
        %v646 = vunpack.c.l.b16 %v626
        %v647 = vunpack.c.l.b16 %v627
        %v648 = vunpack.c.l.b16 %v628
        %v649 = vpack.c.b16 %v642, %v641
        %v650 = vpack.c.b16 %v644, %v643
        %v651 = vpack.c.b16 %v646, %v645
        %v652 = vpack.c.b16 %v648, %v647
        %vm657 = vcmask 523264
        %v659 = vsel %vm657, %v619, 0
        %v662 = vsel %vm657, %v620, 0
        %664 = vmatpush.bf16.msra.mxu0 0
        %665 = vmatpush.bf16.msra.mxu0 0
        %666 = vmatpush.bf16.msra.mxu0 0
        %667 = vmatpush.bf16.msra.mxu0 0
        %668 = vmatpush.bf16.msra.mxu0 %v652
        %669 = vmatpush.bf16.msra.mxu0 %v651
        %670 = vmatpush.bf16.msra.mxu0 %v650
        %671 = vmatpush.bf16.msra.mxu0 %v649
        %672 = vmatmul.bf16.gmra.mxu0 %v659
        %v673 = vpop.f32.mrf.mxu0
        %v674 = vadd.f32 %v631, %v673
        %v675 = vpop.f32.mrf.mxu0
        %v676 = vadd.f32 %v631, %v675
        %677 = vmatmul.bf16.gmra.mxu0 %v662
        %v678 = vpop.f32.mrf.mxu0
        %v679 = vadd.f32 %v631, %v678
        %v680 = vpop.f32.mrf.mxu0
        %v681 = vadd.f32 %v631, %v680
        %682 = vdwg.mxu0
        %683 = vst.msk [vmem:[%s335] sm:$0xff] %vm657, %v615
        %684 = vst.msk [vmem:[%s335 + $0x8] sm:$0xff] %vm657, %v616
        %685 = vst.msk [vmem:[%s335 + $0x10] sm:$0xff] %vm657, %v617
        %686 = vst.msk [vmem:[%s335 + $0x18] sm:$0xff] %vm657, %v618
        %v687 = vxor.u32 %v674, 2147483648
        %v688 = vxor.u32 %v676, 2147483648
        %v689 = vxor.u32 %v679, 2147483648
        %v690 = vxor.u32 %v681, 2147483648
        %v691 = vmul.f32 %v687, 1.442695
        %v692 = vpow.pop %v691
        %v693 = vmul.f32 %v688, 1.442695
        %v694 = vpow.pop %v693
        %v695 = vmul.f32 %v689, 1.442695
        %v696 = vpow.pop %v695
        %v697 = vmul.f32 %v690, 1.442695
        %v698 = vpow.pop %v697
        %v699 = vadd.f32 %v692, 1.0
        %v700 = vadd.f32 %v694, 1.0
        %v701 = vadd.f32 %v696, 1.0
        %v702 = vadd.f32 %v698, 1.0
        %v703 = vrcp.pop %v699
        %v704 = vmul.f32 %v699, %v703
        %v705 = vsub.f32 1.0, %v704
        %v706 = vmul.f32 %v703, %v705
        %v707 = vadd.f32 %v703, %v706
        %vm708 = vweird.f32 %v699
        %vm709 = vweird.f32 %v703
        %vm710 = vmor %vm708, %vm709
        %v711 = vsel %vm710, %v703, %v707
        %v712 = vand.u32 2147483647, %v699
        %vm713 = vcmp.eq.f32.partialorder %v712, 8.507059e+37
        %v714 = vand.u32 %v699, 2147483648
        %v715 = vor.u32 1.1754944e-38, %v714
        %v716 = vsel %vm713, %v715, %v711
        %v717 = vmul.f32 1.0, %v716
        %v718 = vrcp.pop %v700
        %v719 = vmul.f32 %v700, %v718
        %v720 = vsub.f32 1.0, %v719
        %v721 = vmul.f32 %v718, %v720
        %v722 = vadd.f32 %v718, %v721
        %vm723 = vweird.f32 %v700
        %vm724 = vweird.f32 %v718
        %vm725 = vmor %vm723, %vm724
        %v726 = vsel %vm725, %v718, %v722
        %v727 = vand.u32 2147483647, %v700
        %vm728 = vcmp.eq.f32.partialorder %v727, 8.507059e+37
        %v729 = vand.u32 %v700, 2147483648
        %v730 = vor.u32 1.1754944e-38, %v729
        %v731 = vsel %vm728, %v730, %v726
        %v732 = vmul.f32 1.0, %v731
        %v733 = vrcp.pop %v701
        %v734 = vmul.f32 %v701, %v733
        %v735 = vsub.f32 1.0, %v734
        %v736 = vmul.f32 %v733, %v735
        %v737 = vadd.f32 %v733, %v736
        %vm738 = vweird.f32 %v701
        %vm739 = vweird.f32 %v733
        %vm740 = vmor %vm738, %vm739
        %v741 = vsel %vm740, %v733, %v737
        %v742 = vand.u32 2147483647, %v701
        %vm743 = vcmp.eq.f32.partialorder %v742, 8.507059e+37
        %v744 = vand.u32 %v701, 2147483648
        %v745 = vor.u32 1.1754944e-38, %v744
        %v746 = vsel %vm743, %v745, %v741
        %v747 = vmul.f32 1.0, %v746
        %v748 = vrcp.pop %v702
        %v749 = vmul.f32 %v702, %v748
        %v750 = vsub.f32 1.0, %v749
        %v751 = vmul.f32 %v748, %v750
        %v752 = vadd.f32 %v748, %v751
        %vm753 = vweird.f32 %v702
        %vm754 = vweird.f32 %v748
        %vm755 = vmor %vm753, %vm754
        %v756 = vsel %vm755, %v748, %v752
        %v757 = vand.u32 2147483647, %v702
        %vm758 = vcmp.eq.f32.partialorder %v757, 8.507059e+37
        %v759 = vand.u32 %v702, 2147483648
        %v760 = vor.u32 1.1754944e-38, %v759
        %v761 = vsel %vm758, %v760, %v756
        %v762 = vmul.f32 1.0, %v761
        %vm763 = vcmask 15360
        %764 = vst.msk [vmem:[%s341] sm:$0xff] %vm763, %v717
        %765 = vst.msk [vmem:[%s341 + $0x8] sm:$0xff] %vm763, %v732
        %766 = vst.msk [vmem:[%s341 + $0x10] sm:$0xff] %vm763, %v747
        %767 = vst.msk [vmem:[%s341 + $0x18] sm:$0xff] %vm763, %v762
        %s768 = sand.u32 %s186, 1
        %s769 = scalar_lea.sflag [#allocation4], %s768
        %s770 = sand.u32 %s186, 1
        %s771 = smul.addr %s770, 32
        %s772 = scalar_lea.vmem [#allocation5], %s771
        %s773 = sand.u32 %s212, 1
        %s774 = sand.u32 %s212, 1
        %s775 = smul.addr %s774, 32
        %s776 = scalar_lea.vmem [#allocation6], %s775
        // Predicated region
        $region53: #{network_forward.1} parent=47 // pred_check
          %p777 = pneg %p196
        $region54: #{network_forward.1} parent=47 // pred_check_branch
          %779 = sbr.rel (%p777) target = $region56
        $region55: #{network_forward.1} parent=47 // pred_region
          %s780 = smul.u32 4, %s26
          %s781 = ssub.s32 5, %s780
          %p782 = scmp.lt.s32.totalorder %s781, 4
          %s783 = scalar_select %p782, %s781, 4
          %s784 = smul.u32 8, %s783
          %s785 = ssub.s32 32, %s784
          %s786 = sshll.u32 %s785, 4
          %787 = vsyncadd %s769, %s786
          %p788 = scmp.ne.s32.totalorder 0, %s784
          %s789 = smul.addr %s780, 8
          %s790 = scalar_lea.hbm %s7, %s789
          %s791 = smul.u32 8, %s783
          %s792 = sshll.u32 %s772, 4
          %s793 = int_to_ptr.vmem [resolvable:$true] %s792
          %s794 = sshll.u32 %s790, 4
          %s795 = int_to_ptr.hbm [resolvable:$true] %s794
          %s796 = sshll.u32 %s791, 4
          %800 = dma.vmem_to_hbm [thread:$0]  (%p788), %s793, %s796, %s795, %s769, 128, 128, 8
        $region56: #{network_forward.1} parent=47 // pred_fallthru
          _
        // Predicated region
        $region57: #{network_forward.1} parent=47 // pred_check
          %p801 = pneg %p222
        $region58: #{network_forward.1} parent=47 // pred_check_branch
          %803 = sbr.rel (%p801) target = $region60
        $region59: #{network_forward.1} parent=47 // pred_region
          %s804 = smul.u32 4, %s26
          %s805 = ssub.s32 5, %s804
          %p806 = scmp.lt.s32.totalorder %s805, 4
          %s807 = scalar_select %p806, %s805, 4
          %s808 = smul.u32 8, %s807
          %p809 = scmp.ne.s32.totalorder 0, %s808
          %s810 = smul.addr %s804, 8
          %s811 = scalar_lea.vmem %s8, %s810
          // Predicated region
          $region61: #{network_forward.1} parent=59 // pred_check
            %p812 = pneg %p809
          $region62: #{network_forward.1} parent=59 // pred_check_branch
            %814 = sbr.rel (%p812) target = $region64
          $region63: #{network_forward.1} parent=59 // pred_region
            // Predicated region
            $region65: #{network_forward.1} parent=63 // pred_check
              _
            $region66: #{network_forward.1} parent=63 // pred_check_branch
              %816 = sbr.rel (0) target = $region68
            $region67: #{network_forward.1} parent=63 // pred_region
              // Predicated region
              $region87: #{network_forward.1} parent=67 // pred_check
                _
              $region88: #{network_forward.1} parent=67 // pred_check_branch
                %872 = sbr.rel (0) target = $region90
              $region89: #{network_forward.1} parent=67 // pred_region
                %s873 = sshrl.u32 %s807, 2
                // While loop
                $region91: #{network_forward.1} parent=89 // loop_pre_header
                  _
                $region92: #{network_forward.1} parent=89 // loop_header
                  %s875 = sphi 0, %s877
                  %p876 = scmp.ge.s32.totalorder %s875, %s873
                  %s880 = sphi 0, %s893
                  %s881 = sphi %s776, %s896
                  %s882 = sphi %s811, %s897
                $region93: #{network_forward.1} parent=89 // loop_header_branch
                  %879 = sbr.rel (%p876) target = $region97
                $region94: #{network_forward.1} parent=89 // loop_body
                  %v883 = vld [vmem:[%s881] sm:$0xff]
                  %884 = vst [vmem:[%s882] sm:$0xff] %v883
                  %v885 = vld [vmem:[%s881 + $0x8] sm:$0xff]
                  %886 = vst [vmem:[%s882 + $0x8] sm:$0xff] %v885
                  %v887 = vld [vmem:[%s881 + $0x10] sm:$0xff]
                  %888 = vst [vmem:[%s882 + $0x10] sm:$0xff] %v887
                  %v889 = vld [vmem:[%s881 + $0x18] sm:$0xff]
                  %890 = vst [vmem:[%s882 + $0x18] sm:$0xff] %v889
                  %s891 = sadd.s32 1, %s880
                  %p892 = scmp.ge.s32.totalorder %s891, %s873
                  %s893 = scalar_select %p892, 0, %s891
                  %s894 = smul.u32 %s893, 32
                  %s895 = smul.u32 %s893, 32
                  %s896 = scalar_lea.vmem %s776, %s894 [#allocation6]
                  %s897 = scalar_lea.vmem %s811, %s895
                $region95: #{network_forward.1} parent=89 // loop_footer
                  %s877 = sadd.s32 %s875, 1
                $region96: #{network_forward.1} parent=89 // loop_footer_branch
                  %874 = sbr.rel target = $region92
                $region97: #{network_forward.1} parent=89 // loop_exit
                  _
                %s898 = sshrl.u32 %s807, 2
                %s899 = sand.u32 %s807, 3
                %s900 = smul.u32 %s898, 4
                %s901 = smul.u32 8, %s900
                %s902 = scalar_lea.vmem %s776, %s901 [#allocation6]
                %s903 = smul.u32 8, %s900
                %s904 = scalar_lea.vmem %s811, %s903
                // While loop
                $region98: #{network_forward.1} parent=89 // loop_pre_header
                  _
                $region99: #{network_forward.1} parent=89 // loop_header
                  %s906 = sphi 0, %s908
                  %p907 = scmp.ge.s32.totalorder %s906, %s899
                  %s911 = sphi 0, %s918
                  %s912 = sphi %s902, %s921
                  %s913 = sphi %s904, %s922
                $region100: #{network_forward.1} parent=89 // loop_header_branch
                  %910 = sbr.rel (%p907) target = $region104
                $region101: #{network_forward.1} parent=89 // loop_body
                  %v914 = vld [vmem:[%s912] sm:$0xff]
                  %915 = vst [vmem:[%s913] sm:$0xff] %v914
                  %s916 = sadd.s32 1, %s911
                  %p917 = scmp.ge.s32.totalorder %s916, %s899
                  %s918 = scalar_select %p917, 0, %s916
                  %s919 = smul.u32 %s918, 8
                  %s920 = smul.u32 %s918, 8
                  %s921 = scalar_lea.vmem %s902, %s919 [#allocation6]
                  %s922 = scalar_lea.vmem %s904, %s920
                $region102: #{network_forward.1} parent=89 // loop_footer
                  %s908 = sadd.s32 %s906, 1
                $region103: #{network_forward.1} parent=89 // loop_footer_branch
                  %905 = sbr.rel target = $region99
                $region104: #{network_forward.1} parent=89 // loop_exit
                  _
              $region90: #{network_forward.1} parent=67 // pred_fallthru
                _
              // Predicated region
              $region105: #{network_forward.1} parent=67 // pred_check
                _
              $region106: #{network_forward.1} parent=67 // pred_check_branch
                %924 = sbr.rel target = $region108
              $region107: #{network_forward.1} parent=67 // pred_region
                _
              $region108: #{network_forward.1} parent=67 // pred_fallthru
                _
            $region68: #{network_forward.1} parent=63 // pred_fallthru
              _
            // Predicated region
            $region69: #{network_forward.1} parent=63 // pred_check
              _
            $region70: #{network_forward.1} parent=63 // pred_check_branch
              %818 = sbr.rel target = $region72
            $region71: #{network_forward.1} parent=63 // pred_region
              %s820 = ssub.s32 256, 1
              %s821 = sshrl.u32 %s807, 2
              // While loop
              $region73: #{network_forward.1} parent=71 // loop_pre_header
                _
              $region74: #{network_forward.1} parent=71 // loop_header
                %s823 = sphi 0, %s825
                %p824 = scmp.ge.s32.totalorder %s823, %s821
                %s828 = sphi 0, %s841
                %s829 = sphi %s776, %s844
                %s830 = sphi %s811, %s845
              $region75: #{network_forward.1} parent=71 // loop_header_branch
                %827 = sbr.rel (%p824) target = $region79
              $region76: #{network_forward.1} parent=71 // loop_body
                %v831 = vld [vmem:[%s829] sm:%s820]
                %832 = vst [vmem:[%s830] sm:%s820] %v831
                %v833 = vld [vmem:[%s829 + $0x8] sm:%s820]
                %834 = vst [vmem:[%s830 + $0x8] sm:%s820] %v833
                %v835 = vld [vmem:[%s829 + $0x10] sm:%s820]
                %836 = vst [vmem:[%s830 + $0x10] sm:%s820] %v835
                %v837 = vld [vmem:[%s829 + $0x18] sm:%s820]
                %838 = vst [vmem:[%s830 + $0x18] sm:%s820] %v837
                %s839 = sadd.s32 1, %s828
                %p840 = scmp.ge.s32.totalorder %s839, %s821
                %s841 = scalar_select %p840, 0, %s839
                %s842 = smul.u32 %s841, 32
                %s843 = smul.u32 %s841, 32
                %s844 = scalar_lea.vmem %s776, %s842 [#allocation6]
                %s845 = scalar_lea.vmem %s811, %s843
              $region77: #{network_forward.1} parent=71 // loop_footer
                %s825 = sadd.s32 %s823, 1
              $region78: #{network_forward.1} parent=71 // loop_footer_branch
                %822 = sbr.rel target = $region74
              $region79: #{network_forward.1} parent=71 // loop_exit
                _
              %s846 = sshrl.u32 %s807, 2
              %s847 = sand.u32 %s807, 3
              %s848 = smul.u32 %s846, 4
              %s849 = smul.u32 8, %s848
              %s850 = scalar_lea.vmem %s776, %s849 [#allocation6]
              %s851 = smul.u32 8, %s848
              %s852 = scalar_lea.vmem %s811, %s851
              // While loop
              $region80: #{network_forward.1} parent=71 // loop_pre_header
                _
              $region81: #{network_forward.1} parent=71 // loop_header
                %s854 = sphi 0, %s856
                %p855 = scmp.ge.s32.totalorder %s854, %s847
                %s859 = sphi 0, %s866
                %s860 = sphi %s850, %s869
                %s861 = sphi %s852, %s870
              $region82: #{network_forward.1} parent=71 // loop_header_branch
                %858 = sbr.rel (%p855) target = $region86
              $region83: #{network_forward.1} parent=71 // loop_body
                %v862 = vld [vmem:[%s860] sm:%s820]
                %863 = vst [vmem:[%s861] sm:%s820] %v862
                %s864 = sadd.s32 1, %s859
                %p865 = scmp.ge.s32.totalorder %s864, %s847
                %s866 = scalar_select %p865, 0, %s864
                %s867 = smul.u32 %s866, 8
                %s868 = smul.u32 %s866, 8
                %s869 = scalar_lea.vmem %s850, %s867 [#allocation6]
                %s870 = scalar_lea.vmem %s852, %s868
              $region84: #{network_forward.1} parent=71 // loop_footer
                %s856 = sadd.s32 %s854, 1
              $region85: #{network_forward.1} parent=71 // loop_footer_branch
                %853 = sbr.rel target = $region81
              $region86: #{network_forward.1} parent=71 // loop_exit
                _
            $region72: #{network_forward.1} parent=63 // pred_fallthru
              _
          $region64: #{network_forward.1} parent=59 // pred_fallthru
            _
          %925 = vnop
        $region60: #{network_forward.1} parent=47 // pred_fallthru
          _
      $region48: #{network_forward.1} parent=5 // pred_fallthru
        _
      %p926 = scmp.le.s32.totalorder 2, %s21
      // Predicated region
      $region109: #{network_forward.1} parent=5 // pred_check
        %p927 = pneg %p926
      $region110: #{network_forward.1} parent=5 // pred_check_branch
        %929 = sbr.rel (%p927) target = $region112
      $region111: #{network_forward.1} parent=5 // pred_region
        %s930 = ssub.s32 %s21, 2
        // Predicated region
        $region113: #{network_forward.1} parent=111 // pred_check
          %p931 = pneg %p202
        $region114: #{network_forward.1} parent=111 // pred_check_branch
          %933 = sbr.rel (%p931) target = $region116
        $region115: #{network_forward.1} parent=111 // pred_region
          %s934 = sand.u32 %s187, 1
          %s935 = scalar_lea.sflag [#allocation4], %s934
          %s936 = sand.u32 %s187, 1
          %s937 = smul.addr %s936, 32
          %s938 = scalar_lea.vmem [#allocation5], %s937
          %940 = dma.done %s935, 512
        $region116: #{network_forward.1} parent=111 // pred_fallthru
          _
        // Predicated region
        $region117: #{network_forward.1} parent=111 // pred_check
          %p941 = pneg %p228
        $region118: #{network_forward.1} parent=111 // pred_check_branch
          %943 = sbr.rel (%p941) target = $region120
        $region119: #{network_forward.1} parent=111 // pred_region
          %s944 = sand.u32 %s213, 1
          %s945 = sand.u32 %s213, 1
          %s946 = smul.addr %s945, 32
          %s947 = scalar_lea.vmem [#allocation6], %s946
        $region120: #{network_forward.1} parent=111 // pred_fallthru
          _
      $region112: #{network_forward.1} parent=5 // pred_fallthru
        _
    $region6: #{network_forward.1} parent=1 // loop_footer
      %s25 = sadd.s32 1, %s21
    $region7: #{network_forward.1} parent=1 // loop_footer_branch
      %20 = sbr.rel target = $region3
    $region8: #{network_forward.1} parent=1 // loop_exit
      _
    %948 = vsyncpa [#allocation3], 1
    %s949 = scalar_lea.sflag [#allocation3], 1
    %950 = vsyncpa %s949, 1
    %951 = vsyncpa [#allocation4], 1
    %s952 = scalar_lea.sflag [#allocation4], 1
    %953 = vsyncpa %s952, 1

</llo_original>
